<compile_context>
chip_gen: v7x
topology: tpu7x:2x2x1
jax: 0.10.0
libtpu: 0.0.40
codegen_flags: <defaults>
</compile_context>

<pallas_src>
import functools

import jax
import jax.numpy as jnp
from jax.experimental import pallas as pl
from jax.experimental.pallas import tpu as pltpu


def _mgn_pool_kernel(x0_ref, x1_ref, x2_ref, o_ref, *, hw0, hw1, hw2, max_or_avg):
    # x*_ref: (1, C, H*W) one sample of each feature map; o_ref: (1, C, 8)
    f32 = jnp.float32
    x0 = x0_ref[0].astype(f32)   # (C, hw0)
    x1 = x1_ref[0].astype(f32)   # (C, hw1)
    x2 = x2_ref[0].astype(f32)   # (C, hw2)

    def strip_partials(x, hw, k):
        # k equal contiguous strips along the flattened H*W (lane) axis.
        # Returns k arrays of shape (C, 1): sums for 'avg', maxes for 'max'.
        span = hw // k
        lane = jax.lax.broadcasted_iota(jnp.int32, x.shape, 1)
        outs = []
        for j in range(k):
            mask = (lane >= j * span) & (lane < (j + 1) * span)
            if max_or_avg == "avg":
                outs.append(jnp.sum(jnp.where(mask, x, 0.0), axis=1, keepdims=True))
            else:
                outs.append(jnp.max(jnp.where(mask, x, -jnp.inf), axis=1, keepdims=True))
        return outs

    if max_or_avg == "avg":
        g0 = jnp.sum(x0, axis=1, keepdims=True) * (1.0 / hw0)
        s1 = strip_partials(x1, hw1, 2)          # strip sums of feat1
        s2 = strip_partials(x2, hw2, 3)          # strip sums of feat2
        g1 = (s1[0] + s1[1]) * (1.0 / hw1)       # global derived from strips
        g2 = (s2[0] + s2[1] + s2[2]) * (1.0 / hw2)
        p1 = [s * (2.0 / hw1) for s in s1]       # per-strip means
        p2 = [s * (3.0 / hw2) for s in s2]
    else:
        g0 = jnp.max(x0, axis=1, keepdims=True)
        p1 = strip_partials(x1, hw1, 2)          # strip maxes of feat1
        p2 = strip_partials(x2, hw2, 3)          # strip maxes of feat2
        g1 = jnp.maximum(p1[0], p1[1])
        g2 = jnp.maximum(jnp.maximum(p2[0], p2[1]), p2[2])

    # Columns: 0..2 globals, 3..4 feat1 parts, 5..7 feat2 parts.
    result = jnp.concatenate([g0, g1, g2, p1[0], p1[1], p2[0], p2[1], p2[2]], axis=1)
    o_ref[0] = result.astype(o_ref.dtype)        # (C, 8)


def mgn_pool_forward(feat_list, max_or_avg="avg"):
    """Pallas implementation of MGNPool.forward.

    feat_list: list of 3 NCHW arrays (PyTorch convention), same N and C.
    Returns {'pool_feat_list': [8 arrays of shape [N, C, 1, 1]]}:
      0: GP(feat0)  1: GP(feat1)  2: GP(feat2)
      3,4: pool-(2,1) parts of feat1
      5,6,7: pool-(3,1) parts of feat2
    """
    f0, f1, f2 = feat_list
    N, C, H0, W0 = f0.shape
    N1, C1, H1, W1 = f1.shape
    N2, C2, H2, W2 = f2.shape
    assert N1 == N and N2 == N and C1 == C and C2 == C, "fused kernel needs same N, C"
    assert H1 % 2 == 0 and H2 % 3 == 0, "adaptive pool implemented for equal bins"
    hw0, hw1, hw2 = H0 * W0, H1 * W1, H2 * W2

    # Free, contiguous reshapes — no transposes, no extra HBM traffic.
    x0 = f0.reshape(N, C, hw0)
    x1 = f1.reshape(N, C, hw1)
    x2 = f2.reshape(N, C, hw2)

    kernel = functools.partial(
        _mgn_pool_kernel, hw0=hw0, hw1=hw1, hw2=hw2, max_or_avg=max_or_avg
    )
    out = pl.pallas_call(
        kernel,
        out_shape=jax.ShapeDtypeStruct((N, C, 8), f0.dtype),
        grid=(N,),
        in_specs=[
            pl.BlockSpec((1, C, hw0), lambda n: (n, 0, 0)),
            pl.BlockSpec((1, C, hw1), lambda n: (n, 0, 0)),
            pl.BlockSpec((1, C, hw2), lambda n: (n, 0, 0)),
        ],
        out_specs=pl.BlockSpec((1, C, 8), lambda n: (n, 0, 0)),
        compiler_params=pltpu.CompilerParams(dimension_semantics=("parallel",)),
    )(x0, x1, x2)

    pool_feat_list = [out[:, :, j].reshape(N, C, 1, 1) for j in range(8)]
    return {"pool_feat_list": pool_feat_list}


def _reference_adaptive_pool(x_nchw, k, max_or_avg):
    # pure-JAX reference (equal bins), NCHW -> [N, C, k, 1]
    N, C, H, W = x_nchw.shape
    xr = x_nchw.reshape(N, C, k, H // k, W)
    if max_or_avg == "avg":
        return jnp.mean(xr, axis=(3, 4))[..., None]
    return jnp.max(xr, axis=(3, 4))[..., None]


def _reference_mgn_pool(feat_list, max_or_avg):
    refs = []
    for i in range(3):
        refs.append(_reference_adaptive_pool(feat_list[i], 1, max_or_avg))
    for i in range(1, 3):
        temp = _reference_adaptive_pool(feat_list[i], i + 1, max_or_avg)
        for j in range(i + 1):
            refs.append(temp[:, :, j:j + 1, :])
    return refs


if __name__ == "__main__":
    key = jax.random.PRNGKey(0)
    k0, k1, k2 = jax.random.split(key, 3)
    N, C, H, W = 2, 128, 12, 8   # small MGN-like shapes; H divisible by 2 and 3
    feat_list = [
        jax.random.normal(k0, (N, C, H, W), dtype=jnp.float32),
        jax.random.normal(k1, (N, C, H, W), dtype=jnp.float32),
        jax.random.normal(k2, (N, C, H, W), dtype=jnp.float32),
    ]

    ok = True
    for mode in ("avg", "max"):
        out = mgn_pool_forward(feat_list, max_or_avg=mode)
        out = jax.block_until_ready(out)
        pool_feat_list = out["pool_feat_list"]
        refs = _reference_mgn_pool(feat_list, mode)
        assert len(pool_feat_list) == 8
        for got, ref in zip(pool_feat_list, refs):
            assert got.shape == (N, C, 1, 1)
            ok = ok and bool(jnp.allclose(got, ref, atol=1e-5, rtol=1e-5))

    assert ok
    print("KERNEL_OK")
</pallas_src>

<mosaic_0001>
module attributes {stable_mosaic.version = 11 : i64} {
  func.func @_mgn_pool_kernel(%arg0: i32, %arg1: memref<1x128x96xf32, #tpu.memory_space<vmem>>, %arg2: memref<1x128x96xf32, #tpu.memory_space<vmem>>, %arg3: memref<1x128x96xf32, #tpu.memory_space<vmem>>, %arg4: memref<1x128x8xf32, #tpu.memory_space<vmem>>) attributes {dimension_semantics = [#tpu.dimension_semantics<parallel>], iteration_bounds = array<i64: 2>, scalar_prefetch = 0 : i64, scratch_operands = 0 : i64, tpu.core_type = #tpu.core_type<tc>, window_params = [{transform_indices = @transform_0, window_bounds = array<i64: 1, 128, 96>}, {transform_indices = @transform_1, window_bounds = array<i64: 1, 128, 96>}, {transform_indices = @transform_2, window_bounds = array<i64: 1, 128, 96>}, {transform_indices = @transform_3, window_bounds = array<i64: 1, 128, 8>}]} {
    %c0 = arith.constant 0 : index
    %c0_0 = arith.constant 0 : index
    %c0_1 = arith.constant 0 : index
    %0 = vector.load %arg1[%c0, %c0_0, %c0_1] : memref<1x128x96xf32, #tpu.memory_space<vmem>>, vector<1x128x96xf32>
    %1 = vector.shape_cast %0 : vector<1x128x96xf32> to vector<128x96xf32>
    %c0_2 = arith.constant 0 : index
    %c0_3 = arith.constant 0 : index
    %c0_4 = arith.constant 0 : index
    %2 = vector.load %arg2[%c0_2, %c0_3, %c0_4] : memref<1x128x96xf32, #tpu.memory_space<vmem>>, vector<1x128x96xf32>
    %3 = vector.shape_cast %2 : vector<1x128x96xf32> to vector<128x96xf32>
    %c0_5 = arith.constant 0 : index
    %c0_6 = arith.constant 0 : index
    %c0_7 = arith.constant 0 : index
    %4 = vector.load %arg3[%c0_5, %c0_6, %c0_7] : memref<1x128x96xf32, #tpu.memory_space<vmem>>, vector<1x128x96xf32>
    %5 = vector.shape_cast %4 : vector<1x128x96xf32> to vector<128x96xf32>
    %cst = arith.constant dense<0.000000e+00> : vector<128xf32>
    %6 = vector.multi_reduction <add>, %1, %cst [1] : vector<128x96xf32> to vector<128xf32>
    %7 = vector.shape_cast %6 : vector<128xf32> to vector<128x1xf32>
    %cst_8 = arith.constant 0.010416667 : f32
    %8 = vector.broadcast %cst_8 : f32 to vector<128x1xf32>
    %9 = arith.mulf %7, %8 : vector<128x1xf32>
    %10 = tpu.iota {dimensions = array<i32: 1>} : vector<128x96xi32>
    %c0_i32 = arith.constant 0 : i32
    %11 = vector.broadcast %c0_i32 : i32 to vector<128x96xi32>
    %12 = arith.cmpi sge, %10, %11 : vector<128x96xi32>
    %c48_i32 = arith.constant 48 : i32
    %13 = vector.broadcast %c48_i32 : i32 to vector<128x96xi32>
    %14 = arith.cmpi slt, %10, %13 : vector<128x96xi32>
    %15 = arith.andi %12, %14 : vector<128x96xi1>
    %cst_9 = arith.constant 0.000000e+00 : f32
    %16 = vector.broadcast %cst_9 : f32 to vector<128x96xf32>
    %17 = arith.select %15, %3, %16 : vector<128x96xi1>, vector<128x96xf32>
    %cst_10 = arith.constant dense<0.000000e+00> : vector<128xf32>
    %18 = vector.multi_reduction <add>, %17, %cst_10 [1] : vector<128x96xf32> to vector<128xf32>
    %19 = vector.shape_cast %18 : vector<128xf32> to vector<128x1xf32>
    %c48_i32_11 = arith.constant 48 : i32
    %20 = vector.broadcast %c48_i32_11 : i32 to vector<128x96xi32>
    %21 = arith.cmpi sge, %10, %20 : vector<128x96xi32>
    %c96_i32 = arith.constant 96 : i32
    %22 = vector.broadcast %c96_i32 : i32 to vector<128x96xi32>
    %23 = arith.cmpi slt, %10, %22 : vector<128x96xi32>
    %24 = arith.andi %21, %23 : vector<128x96xi1>
    %cst_12 = arith.constant 0.000000e+00 : f32
    %25 = vector.broadcast %cst_12 : f32 to vector<128x96xf32>
    %26 = arith.select %24, %3, %25 : vector<128x96xi1>, vector<128x96xf32>
    %cst_13 = arith.constant dense<0.000000e+00> : vector<128xf32>
    %27 = vector.multi_reduction <add>, %26, %cst_13 [1] : vector<128x96xf32> to vector<128xf32>
    %28 = vector.shape_cast %27 : vector<128xf32> to vector<128x1xf32>
    %29 = tpu.iota {dimensions = array<i32: 1>} : vector<128x96xi32>
    %c0_i32_14 = arith.constant 0 : i32
    %30 = vector.broadcast %c0_i32_14 : i32 to vector<128x96xi32>
    %31 = arith.cmpi sge, %29, %30 : vector<128x96xi32>
    %c32_i32 = arith.constant 32 : i32
    %32 = vector.broadcast %c32_i32 : i32 to vector<128x96xi32>
    %33 = arith.cmpi slt, %29, %32 : vector<128x96xi32>
    %34 = arith.andi %31, %33 : vector<128x96xi1>
    %cst_15 = arith.constant 0.000000e+00 : f32
    %35 = vector.broadcast %cst_15 : f32 to vector<128x96xf32>
    %36 = arith.select %34, %5, %35 : vector<128x96xi1>, vector<128x96xf32>
    %cst_16 = arith.constant dense<0.000000e+00> : vector<128xf32>
    %37 = vector.multi_reduction <add>, %36, %cst_16 [1] : vector<128x96xf32> to vector<128xf32>
    %38 = vector.shape_cast %37 : vector<128xf32> to vector<128x1xf32>
    %c32_i32_17 = arith.constant 32 : i32
    %39 = vector.broadcast %c32_i32_17 : i32 to vector<128x96xi32>
    %40 = arith.cmpi sge, %29, %39 : vector<128x96xi32>
    %c64_i32 = arith.constant 64 : i32
    %41 = vector.broadcast %c64_i32 : i32 to vector<128x96xi32>
    %42 = arith.cmpi slt, %29, %41 : vector<128x96xi32>
    %43 = arith.andi %40, %42 : vector<128x96xi1>
    %cst_18 = arith.constant 0.000000e+00 : f32
    %44 = vector.broadcast %cst_18 : f32 to vector<128x96xf32>
    %45 = arith.select %43, %5, %44 : vector<128x96xi1>, vector<128x96xf32>
    %cst_19 = arith.constant dense<0.000000e+00> : vector<128xf32>
    %46 = vector.multi_reduction <add>, %45, %cst_19 [1] : vector<128x96xf32> to vector<128xf32>
    %47 = vector.shape_cast %46 : vector<128xf32> to vector<128x1xf32>
    %c64_i32_20 = arith.constant 64 : i32
    %48 = vector.broadcast %c64_i32_20 : i32 to vector<128x96xi32>
    %49 = arith.cmpi sge, %29, %48 : vector<128x96xi32>
    %c96_i32_21 = arith.constant 96 : i32
    %50 = vector.broadcast %c96_i32_21 : i32 to vector<128x96xi32>
    %51 = arith.cmpi slt, %29, %50 : vector<128x96xi32>
    %52 = arith.andi %49, %51 : vector<128x96xi1>
    %cst_22 = arith.constant 0.000000e+00 : f32
    %53 = vector.broadcast %cst_22 : f32 to vector<128x96xf32>
    %54 = arith.select %52, %5, %53 : vector<128x96xi1>, vector<128x96xf32>
    %cst_23 = arith.constant dense<0.000000e+00> : vector<128xf32>
    %55 = vector.multi_reduction <add>, %54, %cst_23 [1] : vector<128x96xf32> to vector<128xf32>
    %56 = vector.shape_cast %55 : vector<128xf32> to vector<128x1xf32>
    %57 = arith.addf %19, %28 : vector<128x1xf32>
    %cst_24 = arith.constant 0.010416667 : f32
    %58 = vector.broadcast %cst_24 : f32 to vector<128x1xf32>
    %59 = arith.mulf %57, %58 : vector<128x1xf32>
    %60 = arith.addf %38, %47 : vector<128x1xf32>
    %61 = arith.addf %60, %56 : vector<128x1xf32>
    %cst_25 = arith.constant 0.010416667 : f32
    %62 = vector.broadcast %cst_25 : f32 to vector<128x1xf32>
    %63 = arith.mulf %61, %62 : vector<128x1xf32>
    %cst_26 = arith.constant 0.020833334 : f32
    %64 = vector.broadcast %cst_26 : f32 to vector<128x1xf32>
    %65 = arith.mulf %19, %64 : vector<128x1xf32>
    %cst_27 = arith.constant 0.020833334 : f32
    %66 = vector.broadcast %cst_27 : f32 to vector<128x1xf32>
    %67 = arith.mulf %28, %66 : vector<128x1xf32>
    %cst_28 = arith.constant 3.125000e-02 : f32
    %68 = vector.broadcast %cst_28 : f32 to vector<128x1xf32>
    %69 = arith.mulf %38, %68 : vector<128x1xf32>
    %cst_29 = arith.constant 3.125000e-02 : f32
    %70 = vector.broadcast %cst_29 : f32 to vector<128x1xf32>
    %71 = arith.mulf %47, %70 : vector<128x1xf32>
    %cst_30 = arith.constant 3.125000e-02 : f32
    %72 = vector.broadcast %cst_30 : f32 to vector<128x1xf32>
    %73 = arith.mulf %56, %72 : vector<128x1xf32>
    %74 = tpu.concatenate %9, %59, %63, %65, %67, %69, %71, %73 in 1 : vector<128x1xf32>, vector<128x1xf32>, vector<128x1xf32>, vector<128x1xf32>, vector<128x1xf32>, vector<128x1xf32>, vector<128x1xf32>, vector<128x1xf32> -> vector<128x8xf32>
    %c0_31 = arith.constant 0 : index
    %c0_32 = arith.constant 0 : index
    %c0_33 = arith.constant 0 : index
    %75 = vector.load %arg4[%c0_31, %c0_32, %c0_33] : memref<1x128x8xf32, #tpu.memory_space<vmem>>, vector<1x128x8xf32>
    %76 = vector.shape_cast %75 : vector<1x128x8xf32> to vector<128x8xf32>
    %77 = vector.shape_cast %74 : vector<128x8xf32> to vector<1x128x8xf32>
    tpu.vector_store %arg4[%c0_31, %c0_32, %c0_33], %77 {strides = array<i32>} : memref<1x128x8xf32, #tpu.memory_space<vmem>>, vector<1x128x8xf32>,
    return
  }
  func.func @transform_0(%arg0: i32) -> (i32, i32, i32) {
    %c0_i32 = arith.constant 0 : i32
    %c0_i32_0 = arith.constant 0 : i32
    %c0_i32_1 = arith.constant 0 : i32
    return %arg0, %c0_i32, %c0_i32_0 : i32, i32, i32
  }
  func.func @transform_1(%arg0: i32) -> (i32, i32, i32) {
    %c0_i32 = arith.constant 0 : i32
    %c0_i32_0 = arith.constant 0 : i32
    %c0_i32_1 = arith.constant 0 : i32
    return %arg0, %c0_i32, %c0_i32_0 : i32, i32, i32
  }
  func.func @transform_2(%arg0: i32) -> (i32, i32, i32) {
    %c0_i32 = arith.constant 0 : i32
    %c0_i32_0 = arith.constant 0 : i32
    %c0_i32_1 = arith.constant 0 : i32
    return %arg0, %c0_i32, %c0_i32_0 : i32, i32, i32
  }
  func.func @transform_3(%arg0: i32) -> (i32, i32, i32) {
    %c0_i32 = arith.constant 0 : i32
    %c0_i32_0 = arith.constant 0 : i32
    %c0_i32_1 = arith.constant 0 : i32
    return %arg0, %c0_i32, %c0_i32_0 : i32, i32, i32
  }
}

</mosaic_0001>

<llo_original>
// kernel: tpu_custom_call.1
$region0: #{tpu_custom_call.1}
  #allocation0 [shape = 'u32[]', space=smem, size = 0x4, offset = 0x4, fixed_abs, tag = 'smem constant byte address 0x4 - core index']
  #allocation1 [shape = 'u32[144,128]{1,0:T(1,128)}', space=vmem, size = 0x12000, scoped, tag = 'internal scratch']
  %s0 = inlined_call_operand.vmem [shape: f32[2,128,96], index: 0, kind: input, shape index: {}]
  %s1 = inlined_call_operand.vmem [shape: f32[2,128,96], index: 1, kind: input, shape index: {}]
  %s2 = inlined_call_operand.vmem [shape: f32[2,128,96], index: 2, kind: input, shape index: {}]
  %s3 = inlined_call_operand.vmem [shape: f32[2,128,8], index: 3, kind: output, shape index: {}]
  %s4 = sld [smem:[#allocation0]]
  $region45: #{tpu_custom_call.1} parent=0
    _
  %s6 = ssub.s32 1, %s4
  %s7 = scalar_select 0, %s6, %s4
  loop: start=0, step=1, limit=4
  $region2: #{tpu_custom_call.1} parent=0 // loop_pre_header
    _
  $region3: #{tpu_custom_call.1} parent=0 // loop_header
    %s9 = sphi 0, %s13
    %p10 = scmp.ge.s32.totalorder %s9, 4
    %s19 = sphi 0, %s21
    %s22 = sphi 0, %s19
    %s23 = sphi 0, %s22
    %s39 = sphi 0, %s23
    %s45 = sphi 0, %s47
    %s48 = sphi 0, %s45
    %s49 = sphi 0, %s48
    %s65 = sphi 0, %s49
    %s71 = sphi 0, %s73
    %s74 = sphi 0, %s71
    %s75 = sphi 0, %s74
    %s91 = sphi 0, %s75
    %s97 = sphi 0, %s99
    %s100 = sphi 0, %s97
    %s101 = sphi 0, %s100
    %s117 = sphi 0, %s101
  $region4: #{tpu_custom_call.1} parent=0 // loop_header_branch
    %12 = sbr.rel (%p10) target = $region8
  $region5: #{tpu_custom_call.1} parent=0 // loop_body
    %s14 = ssub.s32 %s9, 1
    %s15 = ssub.s32 %s9, 2
    %s16 = sadd.s32 %s9, 1
    %s17 = ssub.s32 %s9, %s16
    %p18 = scmp.eq.s32.totalorder %s17, 0
    %s20 = sadd.s32 %s19, 1
    %s21 = scalar_select %p18, %s19, %s20
    %p24 = pneg %p18
    %p25 = scmp.eq.s32.totalorder %s9, 1
    %p26 = por %p24, %p25
    %p27 = scmp.ne.s32.totalorder %s19, %s22
    %p28 = scmp.eq.s32.totalorder %s9, 0
    %p29 = por %p27, %p28
    %p30 = scmp.ne.s32.totalorder %s19, %s22
    %p31 = scmp.eq.s32.totalorder %s14, 1
    %p32 = por %p30, %p31
    %p33 = scmp.ne.s32.totalorder %s22, %s23
    %p34 = scmp.eq.s32.totalorder %s14, 0
    %p35 = por %p33, %p34
    %p36 = scmp.ne.s32.totalorder %s22, %s23
    %p37 = scmp.eq.s32.totalorder %s15, 1
    %p38 = por %p36, %p37
    %p40 = scmp.ne.s32.totalorder %s23, %s39
    %p41 = scmp.eq.s32.totalorder %s15, 0
    %p42 = por %p40, %p41
    %s43 = ssub.s32 %s9, %s16
    %p44 = scmp.eq.s32.totalorder %s43, 0
    %s46 = sadd.s32 %s45, 1
    %s47 = scalar_select %p44, %s45, %s46
    %p50 = pneg %p44
    %p51 = scmp.eq.s32.totalorder %s9, 1
    %p52 = por %p50, %p51
    %p53 = scmp.ne.s32.totalorder %s45, %s48
    %p54 = scmp.eq.s32.totalorder %s9, 0
    %p55 = por %p53, %p54
    %p56 = scmp.ne.s32.totalorder %s45, %s48
    %p57 = scmp.eq.s32.totalorder %s14, 1
    %p58 = por %p56, %p57
    %p59 = scmp.ne.s32.totalorder %s48, %s49
    %p60 = scmp.eq.s32.totalorder %s14, 0
    %p61 = por %p59, %p60
    %p62 = scmp.ne.s32.totalorder %s48, %s49
    %p63 = scmp.eq.s32.totalorder %s15, 1
    %p64 = por %p62, %p63
    %p66 = scmp.ne.s32.totalorder %s49, %s65
    %p67 = scmp.eq.s32.totalorder %s15, 0
    %p68 = por %p66, %p67
    %s69 = ssub.s32 %s9, %s16
    %p70 = scmp.eq.s32.totalorder %s69, 0
    %s72 = sadd.s32 %s71, 1
    %s73 = scalar_select %p70, %s71, %s72
    %p76 = pneg %p70
    %p77 = scmp.eq.s32.totalorder %s9, 1
    %p78 = por %p76, %p77
    %p79 = scmp.ne.s32.totalorder %s71, %s74
    %p80 = scmp.eq.s32.totalorder %s9, 0
    %p81 = por %p79, %p80
    %p82 = scmp.ne.s32.totalorder %s71, %s74
    %p83 = scmp.eq.s32.totalorder %s14, 1
    %p84 = por %p82, %p83
    %p85 = scmp.ne.s32.totalorder %s74, %s75
    %p86 = scmp.eq.s32.totalorder %s14, 0
    %p87 = por %p85, %p86
    %p88 = scmp.ne.s32.totalorder %s74, %s75
    %p89 = scmp.eq.s32.totalorder %s15, 1
    %p90 = por %p88, %p89
    %p92 = scmp.ne.s32.totalorder %s75, %s91
    %p93 = scmp.eq.s32.totalorder %s15, 0
    %p94 = por %p92, %p93
    %s95 = ssub.s32 %s9, %s16
    %p96 = scmp.eq.s32.totalorder %s95, 0
    %s98 = sadd.s32 %s97, 1
    %s99 = scalar_select %p96, %s97, %s98
    %p102 = pneg %p96
    %p103 = scmp.eq.s32.totalorder %s9, 1
    %p104 = por %p102, %p103
    %p105 = scmp.ne.s32.totalorder %s97, %s100
    %p106 = scmp.eq.s32.totalorder %s9, 0
    %p107 = por %p105, %p106
    %p108 = scmp.ne.s32.totalorder %s97, %s100
    %p109 = scmp.eq.s32.totalorder %s14, 1
    %p110 = por %p108, %p109
    %p111 = scmp.ne.s32.totalorder %s100, %s101
    %p112 = scmp.eq.s32.totalorder %s14, 0
    %p113 = por %p111, %p112
    %p114 = scmp.ne.s32.totalorder %s100, %s101
    %p115 = scmp.eq.s32.totalorder %s15, 1
    %p116 = por %p114, %p115
    %p118 = scmp.ne.s32.totalorder %s101, %s117
    %p119 = scmp.eq.s32.totalorder %s15, 0
    %p120 = por %p118, %p119
    %p121 = scmp.le.s32.totalorder 1, %s9
    %p122 = scmp.lt.s32.totalorder %s9, 3
    %p123 = pnand %p121, %p122
    %p124 = pneg %p123
    // Predicated region
    $region9: #{tpu_custom_call.1} parent=5 // pred_check
      _
    $region10: #{tpu_custom_call.1} parent=5 // pred_check_branch
      %126 = sbr.rel (%p123) target = $region12
    $region11: #{tpu_custom_call.1} parent=5 // pred_region
      %s127 = ssub.s32 %s9, 1
    $region12: #{tpu_custom_call.1} parent=5 // pred_fallthru
      _
    %p128 = scmp.lt.s32.totalorder %s9, 2
    // Predicated region
    $region13: #{tpu_custom_call.1} parent=5 // pred_check
      %p129 = pneg %p128
    $region14: #{tpu_custom_call.1} parent=5 // pred_check_branch
      %131 = sbr.rel (%p129) target = $region16
    $region15: #{tpu_custom_call.1} parent=5 // pred_region
      // Predicated region
      $region17: #{tpu_custom_call.1} parent=15 // pred_check
        %p132 = pneg %p29
      $region18: #{tpu_custom_call.1} parent=15 // pred_check_branch
        %134 = sbr.rel (%p132) target = $region20
      $region19: #{tpu_custom_call.1} parent=15 // pred_region
        %p135 = scmp.lt.s32.totalorder %s9, 1
        %s136 = scalar_select %p135, %s9, 1
        %s137 = smul.addr %s136, 16
        %s138 = smul.addr %s137, 8
        %s139 = scalar_lea.vmem %s0, %s138
      $region20: #{tpu_custom_call.1} parent=15 // pred_fallthru
        _
      // Predicated region
      $region21: #{tpu_custom_call.1} parent=15 // pred_check
        %p140 = pneg %p55
      $region22: #{tpu_custom_call.1} parent=15 // pred_check_branch
        %142 = sbr.rel (%p140) target = $region24
      $region23: #{tpu_custom_call.1} parent=15 // pred_region
        %p143 = scmp.lt.s32.totalorder %s9, 1
        %s144 = scalar_select %p143, %s9, 1
        %s145 = smul.addr %s144, 16
        %s146 = smul.addr %s145, 8
        %s147 = scalar_lea.vmem %s1, %s146
      $region24: #{tpu_custom_call.1} parent=15 // pred_fallthru
        _
      // Predicated region
      $region25: #{tpu_custom_call.1} parent=15 // pred_check
        %p148 = pneg %p81
      $region26: #{tpu_custom_call.1} parent=15 // pred_check_branch
        %150 = sbr.rel (%p148) target = $region28
      $region27: #{tpu_custom_call.1} parent=15 // pred_region
        %p151 = scmp.lt.s32.totalorder %s9, 1
        %s152 = scalar_select %p151, %s9, 1
        %s153 = smul.addr %s152, 16
        %s154 = smul.addr %s153, 8
        %s155 = scalar_lea.vmem %s2, %s154
      $region28: #{tpu_custom_call.1} parent=15 // pred_fallthru
        _
    $region16: #{tpu_custom_call.1} parent=5 // pred_fallthru
      _
    %p156 = scmp.le.s32.totalorder 1, %s9
    %p157 = scmp.lt.s32.totalorder %s9, 3
    %p158 = pnand %p156, %p157
    %p159 = pneg %p158
    // Predicated region
    $region29: #{tpu_custom_call.1} parent=5 // pred_check
      _
    $region30: #{tpu_custom_call.1} parent=5 // pred_check_branch
      %161 = sbr.rel (%p158) target = $region32
    $region31: #{tpu_custom_call.1} parent=5 // pred_region
      %s162 = ssub.s32 %s9, 1
      %p163 = scmp.lt.s32.totalorder %s14, 1
      %s164 = scalar_select %p163, %s14, 1
      %s165 = smul.addr %s164, 16
      %s166 = smul.addr %s165, 8
      %s167 = scalar_lea.vmem %s0, %s166
      %p168 = pneg %p35
      %p169 = pneg %p32
      %p170 = scmp.lt.s32.totalorder %s14, 1
      %s171 = scalar_select %p170, %s14, 1
      %s172 = smul.addr %s171, 16
      %s173 = smul.addr %s172, 8
      %s174 = scalar_lea.vmem %s1, %s173
      %p175 = pneg %p61
      %p176 = pneg %p58
      %p177 = scmp.lt.s32.totalorder %s14, 1
      %s178 = scalar_select %p177, %s14, 1
      %s179 = smul.addr %s178, 16
      %s180 = smul.addr %s179, 8
      %s181 = scalar_lea.vmem %s2, %s180
      %p182 = pneg %p87
      %p183 = pneg %p84
      %p184 = pneg %p113
      %p185 = pneg %p110
      %p186 = scmp.lt.s32.totalorder %s14, 1
      %s187 = scalar_select %p186, %s14, 1
      %s188 = smul.addr %s187, 16
      %s189 = smul.addr %s188, 8
      %s190 = scalar_lea.vmem %s3, %s189
      %p191 = scmp.lt.s32.totalorder %s14, 1
      %s192 = scalar_select %p191, %s14, 1
      %s193 = smul.addr %s192, 16
      %s194 = smul.addr %s193, 8
      %s195 = scalar_lea.vmem %s0, %s194
      %p196 = scmp.lt.s32.totalorder %s14, 1
      %s197 = scalar_select %p196, %s14, 1
      %s198 = smul.addr %s197, 16
      %s199 = smul.addr %s198, 8
      %s200 = scalar_lea.vmem %s1, %s199
      %p201 = scmp.lt.s32.totalorder %s14, 1
      %s202 = scalar_select %p201, %s14, 1
      %s203 = smul.addr %s202, 16
      %s204 = smul.addr %s203, 8
      %s205 = scalar_lea.vmem %s2, %s204
      %p206 = scmp.lt.s32.totalorder %s14, 1
      %s207 = scalar_select %p206, %s14, 1
      %s208 = smul.addr %s207, 16
      %s209 = smul.addr %s208, 8
      %s210 = scalar_lea.vmem %s3, %s209
      %v211 = vld [vmem:[%s195] sm:$0xff]
      %v212 = vld [vmem:[%s195 + $0x8] sm:$0xff]
      %v213 = vld [vmem:[%s195 + $0x10] sm:$0xff]
      %v214 = vld [vmem:[%s195 + $0x18] sm:$0xff]
      %v215 = vld [vmem:[%s195 + $0x20] sm:$0xff]
      %v216 = vld [vmem:[%s195 + $0x28] sm:$0xff]
      %v217 = vld [vmem:[%s195 + $0x30] sm:$0xff]
      %v218 = vld [vmem:[%s195 + $0x38] sm:$0xff]
      %v219 = vld [vmem:[%s195 + $0x40] sm:$0xff]
      %v220 = vld [vmem:[%s195 + $0x48] sm:$0xff]
      %v221 = vld [vmem:[%s195 + $0x50] sm:$0xff]
      %v222 = vld [vmem:[%s195 + $0x58] sm:$0xff]
      %v223 = vld [vmem:[%s195 + $0x60] sm:$0xff]
      %v224 = vld [vmem:[%s195 + $0x68] sm:$0xff]
      %v225 = vld [vmem:[%s195 + $0x70] sm:$0xff]
      %v226 = vld [vmem:[%s195 + $0x78] sm:$0xff]
      %v227 = vld [vmem:[%s200] sm:$0xff]
      %v228 = vld [vmem:[%s200 + $0x8] sm:$0xff]
      %v229 = vld [vmem:[%s200 + $0x10] sm:$0xff]
      %v230 = vld [vmem:[%s200 + $0x18] sm:$0xff]
      %v231 = vld [vmem:[%s200 + $0x20] sm:$0xff]
      %v232 = vld [vmem:[%s200 + $0x28] sm:$0xff]
      %v233 = vld [vmem:[%s200 + $0x30] sm:$0xff]
      %v234 = vld [vmem:[%s200 + $0x38] sm:$0xff]
      %v235 = vld [vmem:[%s200 + $0x40] sm:$0xff]
      %v236 = vld [vmem:[%s200 + $0x48] sm:$0xff]
      %v237 = vld [vmem:[%s200 + $0x50] sm:$0xff]
      %v238 = vld [vmem:[%s200 + $0x58] sm:$0xff]
      %v239 = vld [vmem:[%s200 + $0x60] sm:$0xff]
      %v240 = vld [vmem:[%s200 + $0x68] sm:$0xff]
      %v241 = vld [vmem:[%s200 + $0x70] sm:$0xff]
      %v242 = vld [vmem:[%s200 + $0x78] sm:$0xff]
      %v243 = vld [vmem:[%s205] sm:$0xff]
      %v244 = vld [vmem:[%s205 + $0x8] sm:$0xff]
      %v245 = vld [vmem:[%s205 + $0x10] sm:$0xff]
      %v246 = vld [vmem:[%s205 + $0x18] sm:$0xff]
      %v247 = vld [vmem:[%s205 + $0x20] sm:$0xff]
      %v248 = vld [vmem:[%s205 + $0x28] sm:$0xff]
      %v249 = vld [vmem:[%s205 + $0x30] sm:$0xff]
      %v250 = vld [vmem:[%s205 + $0x38] sm:$0xff]
      %v251 = vld [vmem:[%s205 + $0x40] sm:$0xff]
      %v252 = vld [vmem:[%s205 + $0x48] sm:$0xff]
      %v253 = vld [vmem:[%s205 + $0x50] sm:$0xff]
      %v254 = vld [vmem:[%s205 + $0x58] sm:$0xff]
      %v255 = vld [vmem:[%s205 + $0x60] sm:$0xff]
      %v256 = vld [vmem:[%s205 + $0x68] sm:$0xff]
      %v257 = vld [vmem:[%s205 + $0x70] sm:$0xff]
      %v258 = vld [vmem:[%s205 + $0x78] sm:$0xff]
      %vm259 = vcmask 785408
      %v260 = vsel %vm259, %v211, 0.0
      %261 = vadd.xlane.f32.xlu0 %v260
      %v262 = vpop.xlane.xlu0 %261
      %v263 = vsel %vm259, %v212, 0.0
      %264 = vadd.xlane.f32.xlu0 %v263
      %v265 = vpop.xlane.xlu0 %264
      %v266 = vsel %vm259, %v213, 0.0
      %267 = vadd.xlane.f32.xlu0 %v266
      %v268 = vpop.xlane.xlu0 %267
      %v269 = vsel %vm259, %v214, 0.0
      %270 = vadd.xlane.f32.xlu0 %v269
      %v271 = vpop.xlane.xlu0 %270
      %v272 = vsel %vm259, %v215, 0.0
      %273 = vadd.xlane.f32.xlu0 %v272
      %v274 = vpop.xlane.xlu0 %273
      %v275 = vsel %vm259, %v216, 0.0
      %276 = vadd.xlane.f32.xlu0 %v275
      %v277 = vpop.xlane.xlu0 %276
      %v278 = vsel %vm259, %v217, 0.0
      %279 = vadd.xlane.f32.xlu0 %v278
      %v280 = vpop.xlane.xlu0 %279
      %v281 = vsel %vm259, %v218, 0.0
      %282 = vadd.xlane.f32.xlu0 %v281
      %v283 = vpop.xlane.xlu0 %282
      %v284 = vsel %vm259, %v219, 0.0
      %285 = vadd.xlane.f32.xlu0 %v284
      %v286 = vpop.xlane.xlu0 %285
      %v287 = vsel %vm259, %v220, 0.0
      %288 = vadd.xlane.f32.xlu0 %v287
      %v289 = vpop.xlane.xlu0 %288
      %v290 = vsel %vm259, %v221, 0.0
      %291 = vadd.xlane.f32.xlu0 %v290
      %v292 = vpop.xlane.xlu0 %291
      %v293 = vsel %vm259, %v222, 0.0
      %294 = vadd.xlane.f32.xlu0 %v293
      %v295 = vpop.xlane.xlu0 %294
      %v296 = vsel %vm259, %v223, 0.0
      %297 = vadd.xlane.f32.xlu0 %v296
      %v298 = vpop.xlane.xlu0 %297
      %v299 = vsel %vm259, %v224, 0.0
      %300 = vadd.xlane.f32.xlu0 %v299
      %v301 = vpop.xlane.xlu0 %300
      %v302 = vsel %vm259, %v225, 0.0
      %303 = vadd.xlane.f32.xlu0 %v302
      %v304 = vpop.xlane.xlu0 %303
      %v305 = vsel %vm259, %v226, 0.0
      %306 = vadd.xlane.f32.xlu0 %v305
      %v307 = vpop.xlane.xlu0 %306
      %v308 = vmul.f32 %v262, 0.010416667
      %v309 = vmul.f32 %v265, 0.010416667
      %v310 = vmul.f32 %v268, 0.010416667
      %v311 = vmul.f32 %v271, 0.010416667
      %v312 = vmul.f32 %v274, 0.010416667
      %v313 = vmul.f32 %v277, 0.010416667
      %v314 = vmul.f32 %v280, 0.010416667
      %v315 = vmul.f32 %v283, 0.010416667
      %v316 = vmul.f32 %v286, 0.010416667
      %v317 = vmul.f32 %v289, 0.010416667
      %v318 = vmul.f32 %v292, 0.010416667
      %v319 = vmul.f32 %v295, 0.010416667
      %v320 = vmul.f32 %v298, 0.010416667
      %v321 = vmul.f32 %v301, 0.010416667
      %v322 = vmul.f32 %v304, 0.010416667
      %v323 = vmul.f32 %v307, 0.010416667
      %v324 = vlaneseq
      %v325 = vand.u32 %v324, 127
      %vm326 = vcmp.ge.s32.totalorder %v325, 0
      %vm327 = vcmp.lt.s32.totalorder %v325, 48
      %vm328 = vmand %vm326, %vm327
      %v329 = vsel %vm328, %v227, 0.0
      %v330 = vsel %vm328, %v228, 0.0
      %v331 = vsel %vm328, %v229, 0.0
      %v332 = vsel %vm328, %v230, 0.0
      %v333 = vsel %vm328, %v231, 0.0
      %v334 = vsel %vm328, %v232, 0.0
      %v335 = vsel %vm328, %v233, 0.0
      %v336 = vsel %vm328, %v234, 0.0
      %v337 = vsel %vm328, %v235, 0.0
      %v338 = vsel %vm328, %v236, 0.0
      %v339 = vsel %vm328, %v237, 0.0
      %v340 = vsel %vm328, %v238, 0.0
      %v341 = vsel %vm328, %v239, 0.0
      %v342 = vsel %vm328, %v240, 0.0
      %v343 = vsel %vm328, %v241, 0.0
      %v344 = vsel %vm328, %v242, 0.0
      %v345 = vsel %vm259, %v329, 0.0
      %346 = vadd.xlane.f32.xlu0 %v345
      %v347 = vpop.xlane.xlu0 %346
      %v348 = vsel %vm259, %v330, 0.0
      %349 = vadd.xlane.f32.xlu0 %v348
      %v350 = vpop.xlane.xlu0 %349
      %v351 = vsel %vm259, %v331, 0.0
      %352 = vadd.xlane.f32.xlu0 %v351
      %v353 = vpop.xlane.xlu0 %352
      %v354 = vsel %vm259, %v332, 0.0
      %355 = vadd.xlane.f32.xlu0 %v354
      %v356 = vpop.xlane.xlu0 %355
      %v357 = vsel %vm259, %v333, 0.0
      %358 = vadd.xlane.f32.xlu0 %v357
      %v359 = vpop.xlane.xlu0 %358
      %v360 = vsel %vm259, %v334, 0.0
      %361 = vadd.xlane.f32.xlu0 %v360
      %v362 = vpop.xlane.xlu0 %361
      %v363 = vsel %vm259, %v335, 0.0
      %364 = vadd.xlane.f32.xlu0 %v363
      %v365 = vpop.xlane.xlu0 %364
      %v366 = vsel %vm259, %v336, 0.0
      %367 = vadd.xlane.f32.xlu0 %v366
      %v368 = vpop.xlane.xlu0 %367
      %v369 = vsel %vm259, %v337, 0.0
      %370 = vadd.xlane.f32.xlu0 %v369
      %v371 = vpop.xlane.xlu0 %370
      %v372 = vsel %vm259, %v338, 0.0
      %373 = vadd.xlane.f32.xlu0 %v372
      %v374 = vpop.xlane.xlu0 %373
      %v375 = vsel %vm259, %v339, 0.0
      %376 = vadd.xlane.f32.xlu0 %v375
      %v377 = vpop.xlane.xlu0 %376
      %v378 = vsel %vm259, %v340, 0.0
      %379 = vadd.xlane.f32.xlu0 %v378
      %v380 = vpop.xlane.xlu0 %379
      %v381 = vsel %vm259, %v341, 0.0
      %382 = vadd.xlane.f32.xlu0 %v381
      %v383 = vpop.xlane.xlu0 %382
      %v384 = vsel %vm259, %v342, 0.0
      %385 = vadd.xlane.f32.xlu0 %v384
      %v386 = vpop.xlane.xlu0 %385
      %v387 = vsel %vm259, %v343, 0.0
      %388 = vadd.xlane.f32.xlu0 %v387
      %v389 = vpop.xlane.xlu0 %388
      %v390 = vsel %vm259, %v344, 0.0
      %391 = vadd.xlane.f32.xlu0 %v390
      %v392 = vpop.xlane.xlu0 %391
      %vm393 = vcmp.ge.s32.totalorder %v325, 48
      %vm394 = vcmp.lt.s32.totalorder %v325, 96
      %vm395 = vmand %vm393, %vm394
      %v396 = vsel %vm395, %v227, 0.0
      %v397 = vsel %vm395, %v228, 0.0
      %v398 = vsel %vm395, %v229, 0.0
      %v399 = vsel %vm395, %v230, 0.0
      %v400 = vsel %vm395, %v231, 0.0
      %v401 = vsel %vm395, %v232, 0.0
      %v402 = vsel %vm395, %v233, 0.0
      %v403 = vsel %vm395, %v234, 0.0
      %v404 = vsel %vm395, %v235, 0.0
      %v405 = vsel %vm395, %v236, 0.0
      %v406 = vsel %vm395, %v237, 0.0
      %v407 = vsel %vm395, %v238, 0.0
      %v408 = vsel %vm395, %v239, 0.0
      %v409 = vsel %vm395, %v240, 0.0
      %v410 = vsel %vm395, %v241, 0.0
      %v411 = vsel %vm395, %v242, 0.0
      %v412 = vsel %vm259, %v396, 0.0
      %413 = vadd.xlane.f32.xlu0 %v412
      %v414 = vpop.xlane.xlu0 %413
      %v415 = vsel %vm259, %v397, 0.0
      %416 = vadd.xlane.f32.xlu0 %v415
      %v417 = vpop.xlane.xlu0 %416
      %v418 = vsel %vm259, %v398, 0.0
      %419 = vadd.xlane.f32.xlu0 %v418
      %v420 = vpop.xlane.xlu0 %419
      %v421 = vsel %vm259, %v399, 0.0
      %422 = vadd.xlane.f32.xlu0 %v421
      %v423 = vpop.xlane.xlu0 %422
      %v424 = vsel %vm259, %v400, 0.0
      %425 = vadd.xlane.f32.xlu0 %v424
      %v426 = vpop.xlane.xlu0 %425
      %v427 = vsel %vm259, %v401, 0.0
      %428 = vadd.xlane.f32.xlu0 %v427
      %v429 = vpop.xlane.xlu0 %428
      %v430 = vsel %vm259, %v402, 0.0
      %431 = vadd.xlane.f32.xlu0 %v430
      %v432 = vpop.xlane.xlu0 %431
      %v433 = vsel %vm259, %v403, 0.0
      %434 = vadd.xlane.f32.xlu0 %v433
      %v435 = vpop.xlane.xlu0 %434
      %v436 = vsel %vm259, %v404, 0.0
      %437 = vadd.xlane.f32.xlu0 %v436
      %v438 = vpop.xlane.xlu0 %437
      %v439 = vsel %vm259, %v405, 0.0
      %440 = vadd.xlane.f32.xlu0 %v439
      %v441 = vpop.xlane.xlu0 %440
      %v442 = vsel %vm259, %v406, 0.0
      %443 = vadd.xlane.f32.xlu0 %v442
      %v444 = vpop.xlane.xlu0 %443
      %v445 = vsel %vm259, %v407, 0.0
      %446 = vadd.xlane.f32.xlu0 %v445
      %v447 = vpop.xlane.xlu0 %446
      %v448 = vsel %vm259, %v408, 0.0
      %449 = vadd.xlane.f32.xlu0 %v448
      %v450 = vpop.xlane.xlu0 %449
      %v451 = vsel %vm259, %v409, 0.0
      %452 = vadd.xlane.f32.xlu0 %v451
      %v453 = vpop.xlane.xlu0 %452
      %v454 = vsel %vm259, %v410, 0.0
      %455 = vadd.xlane.f32.xlu0 %v454
      %v456 = vpop.xlane.xlu0 %455
      %v457 = vsel %vm259, %v411, 0.0
      %458 = vadd.xlane.f32.xlu0 %v457
      %v459 = vpop.xlane.xlu0 %458
      %vm460 = vcmp.lt.s32.totalorder %v325, 32
      %vm461 = vmand %vm326, %vm460
      %v462 = vsel %vm461, %v243, 0.0
      %v463 = vsel %vm461, %v244, 0.0
      %v464 = vsel %vm461, %v245, 0.0
      %v465 = vsel %vm461, %v246, 0.0
      %v466 = vsel %vm461, %v247, 0.0
      %v467 = vsel %vm461, %v248, 0.0
      %v468 = vsel %vm461, %v249, 0.0
      %v469 = vsel %vm461, %v250, 0.0
      %v470 = vsel %vm461, %v251, 0.0
      %v471 = vsel %vm461, %v252, 0.0
      %v472 = vsel %vm461, %v253, 0.0
      %v473 = vsel %vm461, %v254, 0.0
      %v474 = vsel %vm461, %v255, 0.0
      %v475 = vsel %vm461, %v256, 0.0
      %v476 = vsel %vm461, %v257, 0.0
      %v477 = vsel %vm461, %v258, 0.0
      %v478 = vsel %vm259, %v462, 0.0
      %479 = vadd.xlane.f32.xlu0 %v478
      %v480 = vpop.xlane.xlu0 %479
      %v481 = vsel %vm259, %v463, 0.0
      %482 = vadd.xlane.f32.xlu0 %v481
      %v483 = vpop.xlane.xlu0 %482
      %v484 = vsel %vm259, %v464, 0.0
      %485 = vadd.xlane.f32.xlu0 %v484
      %v486 = vpop.xlane.xlu0 %485
      %v487 = vsel %vm259, %v465, 0.0
      %488 = vadd.xlane.f32.xlu0 %v487
      %v489 = vpop.xlane.xlu0 %488
      %v490 = vsel %vm259, %v466, 0.0
      %491 = vadd.xlane.f32.xlu0 %v490
      %v492 = vpop.xlane.xlu0 %491
      %v493 = vsel %vm259, %v467, 0.0
      %494 = vadd.xlane.f32.xlu0 %v493
      %v495 = vpop.xlane.xlu0 %494
      %v496 = vsel %vm259, %v468, 0.0
      %497 = vadd.xlane.f32.xlu0 %v496
      %v498 = vpop.xlane.xlu0 %497
      %v499 = vsel %vm259, %v469, 0.0
      %500 = vadd.xlane.f32.xlu0 %v499
      %v501 = vpop.xlane.xlu0 %500
      %v502 = vsel %vm259, %v470, 0.0
      %503 = vadd.xlane.f32.xlu0 %v502
      %v504 = vpop.xlane.xlu0 %503
      %v505 = vsel %vm259, %v471, 0.0
      %506 = vadd.xlane.f32.xlu0 %v505
      %v507 = vpop.xlane.xlu0 %506
      %v508 = vsel %vm259, %v472, 0.0
      %509 = vadd.xlane.f32.xlu0 %v508
      %v510 = vpop.xlane.xlu0 %509
      %v511 = vsel %vm259, %v473, 0.0
      %512 = vadd.xlane.f32.xlu0 %v511
      %v513 = vpop.xlane.xlu0 %512
      %v514 = vsel %vm259, %v474, 0.0
      %515 = vadd.xlane.f32.xlu0 %v514
      %v516 = vpop.xlane.xlu0 %515
      %v517 = vsel %vm259, %v475, 0.0
      %518 = vadd.xlane.f32.xlu0 %v517
      %v519 = vpop.xlane.xlu0 %518
      %v520 = vsel %vm259, %v476, 0.0
      %521 = vadd.xlane.f32.xlu0 %v520
      %v522 = vpop.xlane.xlu0 %521
      %v523 = vsel %vm259, %v477, 0.0
      %524 = vadd.xlane.f32.xlu0 %v523
      %v525 = vpop.xlane.xlu0 %524
      %vm526 = vcmp.ge.s32.totalorder %v325, 32
      %vm527 = vcmp.lt.s32.totalorder %v325, 64
      %vm528 = vmand %vm526, %vm527
      %v529 = vsel %vm528, %v243, 0.0
      %v530 = vsel %vm528, %v244, 0.0
      %v531 = vsel %vm528, %v245, 0.0
      %v532 = vsel %vm528, %v246, 0.0
      %v533 = vsel %vm528, %v247, 0.0
      %v534 = vsel %vm528, %v248, 0.0
      %v535 = vsel %vm528, %v249, 0.0
      %v536 = vsel %vm528, %v250, 0.0
      %v537 = vsel %vm528, %v251, 0.0
      %v538 = vsel %vm528, %v252, 0.0
      %v539 = vsel %vm528, %v253, 0.0
      %v540 = vsel %vm528, %v254, 0.0
      %v541 = vsel %vm528, %v255, 0.0
      %v542 = vsel %vm528, %v256, 0.0
      %v543 = vsel %vm528, %v257, 0.0
      %v544 = vsel %vm528, %v258, 0.0
      %v545 = vsel %vm259, %v529, 0.0
      %546 = vadd.xlane.f32.xlu0 %v545
      %v547 = vpop.xlane.xlu0 %546
      %v548 = vsel %vm259, %v530, 0.0
      %549 = vadd.xlane.f32.xlu0 %v548
      %v550 = vpop.xlane.xlu0 %549
      %v551 = vsel %vm259, %v531, 0.0
      %552 = vadd.xlane.f32.xlu0 %v551
      %v553 = vpop.xlane.xlu0 %552
      %v554 = vsel %vm259, %v532, 0.0
      %555 = vadd.xlane.f32.xlu0 %v554
      %v556 = vpop.xlane.xlu0 %555
      %v557 = vsel %vm259, %v533, 0.0
      %558 = vadd.xlane.f32.xlu0 %v557
      %v559 = vpop.xlane.xlu0 %558
      %v560 = vsel %vm259, %v534, 0.0
      %561 = vadd.xlane.f32.xlu0 %v560
      %v562 = vpop.xlane.xlu0 %561
      %v563 = vsel %vm259, %v535, 0.0
      %564 = vadd.xlane.f32.xlu0 %v563
      %v565 = vpop.xlane.xlu0 %564
      %v566 = vsel %vm259, %v536, 0.0
      %567 = vadd.xlane.f32.xlu0 %v566
      %v568 = vpop.xlane.xlu0 %567
      %v569 = vsel %vm259, %v537, 0.0
      %570 = vadd.xlane.f32.xlu0 %v569
      %v571 = vpop.xlane.xlu0 %570
      %v572 = vsel %vm259, %v538, 0.0
      %573 = vadd.xlane.f32.xlu0 %v572
      %v574 = vpop.xlane.xlu0 %573
      %v575 = vsel %vm259, %v539, 0.0
      %576 = vadd.xlane.f32.xlu0 %v575
      %v577 = vpop.xlane.xlu0 %576
      %v578 = vsel %vm259, %v540, 0.0
      %579 = vadd.xlane.f32.xlu0 %v578
      %v580 = vpop.xlane.xlu0 %579
      %v581 = vsel %vm259, %v541, 0.0
      %582 = vadd.xlane.f32.xlu0 %v581
      %v583 = vpop.xlane.xlu0 %582
      %v584 = vsel %vm259, %v542, 0.0
      %585 = vadd.xlane.f32.xlu0 %v584
      %v586 = vpop.xlane.xlu0 %585
      %v587 = vsel %vm259, %v543, 0.0
      %588 = vadd.xlane.f32.xlu0 %v587
      %v589 = vpop.xlane.xlu0 %588
      %v590 = vsel %vm259, %v544, 0.0
      %591 = vadd.xlane.f32.xlu0 %v590
      %v592 = vpop.xlane.xlu0 %591
      %vm593 = vcmp.ge.s32.totalorder %v325, 64
      %vm594 = vmand %vm593, %vm394
      %v595 = vsel %vm594, %v243, 0.0
      %v596 = vsel %vm594, %v244, 0.0
      %v597 = vsel %vm594, %v245, 0.0
      %v598 = vsel %vm594, %v246, 0.0
      %v599 = vsel %vm594, %v247, 0.0
      %v600 = vsel %vm594, %v248, 0.0
      %v601 = vsel %vm594, %v249, 0.0
      %v602 = vsel %vm594, %v250, 0.0
      %v603 = vsel %vm594, %v251, 0.0
      %v604 = vsel %vm594, %v252, 0.0
      %v605 = vsel %vm594, %v253, 0.0
      %v606 = vsel %vm594, %v254, 0.0
      %v607 = vsel %vm594, %v255, 0.0
      %v608 = vsel %vm594, %v256, 0.0
      %v609 = vsel %vm594, %v257, 0.0
      %v610 = vsel %vm594, %v258, 0.0
      %v611 = vsel %vm259, %v595, 0.0
      %612 = vadd.xlane.f32.xlu0 %v611
      %v613 = vpop.xlane.xlu0 %612
      %v614 = vsel %vm259, %v596, 0.0
      %615 = vadd.xlane.f32.xlu0 %v614
      %v616 = vpop.xlane.xlu0 %615
      %v617 = vsel %vm259, %v597, 0.0
      %618 = vadd.xlane.f32.xlu0 %v617
      %v619 = vpop.xlane.xlu0 %618
      %v620 = vsel %vm259, %v598, 0.0
      %621 = vadd.xlane.f32.xlu0 %v620
      %v622 = vpop.xlane.xlu0 %621
      %v623 = vsel %vm259, %v599, 0.0
      %624 = vadd.xlane.f32.xlu0 %v623
      %v625 = vpop.xlane.xlu0 %624
      %v626 = vsel %vm259, %v600, 0.0
      %627 = vadd.xlane.f32.xlu0 %v626
      %v628 = vpop.xlane.xlu0 %627
      %v629 = vsel %vm259, %v601, 0.0
      %630 = vadd.xlane.f32.xlu0 %v629
      %v631 = vpop.xlane.xlu0 %630
      %v632 = vsel %vm259, %v602, 0.0
      %633 = vadd.xlane.f32.xlu0 %v632
      %v634 = vpop.xlane.xlu0 %633
      %v635 = vsel %vm259, %v603, 0.0
      %636 = vadd.xlane.f32.xlu0 %v635
      %v637 = vpop.xlane.xlu0 %636
      %v638 = vsel %vm259, %v604, 0.0
      %639 = vadd.xlane.f32.xlu0 %v638
      %v640 = vpop.xlane.xlu0 %639
      %v641 = vsel %vm259, %v605, 0.0
      %642 = vadd.xlane.f32.xlu0 %v641
      %v643 = vpop.xlane.xlu0 %642
      %v644 = vsel %vm259, %v606, 0.0
      %645 = vadd.xlane.f32.xlu0 %v644
      %v646 = vpop.xlane.xlu0 %645
      %v647 = vsel %vm259, %v607, 0.0
      %648 = vadd.xlane.f32.xlu0 %v647
      %v649 = vpop.xlane.xlu0 %648
      %v650 = vsel %vm259, %v608, 0.0
      %651 = vadd.xlane.f32.xlu0 %v650
      %v652 = vpop.xlane.xlu0 %651
      %v653 = vsel %vm259, %v609, 0.0
      %654 = vadd.xlane.f32.xlu0 %v653
      %v655 = vpop.xlane.xlu0 %654
      %v656 = vsel %vm259, %v610, 0.0
      %657 = vadd.xlane.f32.xlu0 %v656
      %v658 = vpop.xlane.xlu0 %657
      %v659 = vadd.f32 %v347, %v414
      %v660 = vadd.f32 %v350, %v417
      %v661 = vadd.f32 %v353, %v420
      %v662 = vadd.f32 %v356, %v423
      %v663 = vadd.f32 %v359, %v426
      %v664 = vadd.f32 %v362, %v429
      %v665 = vadd.f32 %v365, %v432
      %v666 = vadd.f32 %v368, %v435
      %v667 = vadd.f32 %v371, %v438
      %v668 = vadd.f32 %v374, %v441
      %v669 = vadd.f32 %v377, %v444
      %v670 = vadd.f32 %v380, %v447
      %v671 = vadd.f32 %v383, %v450
      %v672 = vadd.f32 %v386, %v453
      %v673 = vadd.f32 %v389, %v456
      %v674 = vadd.f32 %v392, %v459
      %v675 = vmul.f32 %v659, 0.010416667
      %v676 = vmul.f32 %v660, 0.010416667
      %v677 = vmul.f32 %v661, 0.010416667
      %v678 = vmul.f32 %v662, 0.010416667
      %v679 = vmul.f32 %v663, 0.010416667
      %v680 = vmul.f32 %v664, 0.010416667
      %v681 = vmul.f32 %v665, 0.010416667
      %v682 = vmul.f32 %v666, 0.010416667
      %v683 = vmul.f32 %v667, 0.010416667
      %v684 = vmul.f32 %v668, 0.010416667
      %v685 = vmul.f32 %v669, 0.010416667
      %v686 = vmul.f32 %v670, 0.010416667
      %v687 = vmul.f32 %v671, 0.010416667
      %v688 = vmul.f32 %v672, 0.010416667
      %v689 = vmul.f32 %v673, 0.010416667
      %v690 = vmul.f32 %v674, 0.010416667
      %v691 = vadd.f32 %v480, %v547
      %v692 = vadd.f32 %v483, %v550
      %v693 = vadd.f32 %v486, %v553
      %v694 = vadd.f32 %v489, %v556
      %v695 = vadd.f32 %v492, %v559
      %v696 = vadd.f32 %v495, %v562
      %v697 = vadd.f32 %v498, %v565
      %v698 = vadd.f32 %v501, %v568
      %v699 = vadd.f32 %v504, %v571
      %v700 = vadd.f32 %v507, %v574
      %v701 = vadd.f32 %v510, %v577
      %v702 = vadd.f32 %v513, %v580
      %v703 = vadd.f32 %v516, %v583
      %v704 = vadd.f32 %v519, %v586
      %v705 = vadd.f32 %v522, %v589
      %v706 = vadd.f32 %v525, %v592
      %v707 = vadd.f32 %v691, %v613
      %v708 = vadd.f32 %v692, %v616
      %v709 = vadd.f32 %v693, %v619
      %v710 = vadd.f32 %v694, %v622
      %v711 = vadd.f32 %v695, %v625
      %v712 = vadd.f32 %v696, %v628
      %v713 = vadd.f32 %v697, %v631
      %v714 = vadd.f32 %v698, %v634
      %v715 = vadd.f32 %v699, %v637
      %v716 = vadd.f32 %v700, %v640
      %v717 = vadd.f32 %v701, %v643
      %v718 = vadd.f32 %v702, %v646
      %v719 = vadd.f32 %v703, %v649
      %v720 = vadd.f32 %v704, %v652
      %v721 = vadd.f32 %v705, %v655
      %v722 = vadd.f32 %v706, %v658
      %v723 = vmul.f32 %v707, 0.010416667
      %v724 = vmul.f32 %v708, 0.010416667
      %v725 = vmul.f32 %v709, 0.010416667
      %v726 = vmul.f32 %v710, 0.010416667
      %v727 = vmul.f32 %v711, 0.010416667
      %v728 = vmul.f32 %v712, 0.010416667
      %v729 = vmul.f32 %v713, 0.010416667
      %v730 = vmul.f32 %v714, 0.010416667
      %v731 = vmul.f32 %v715, 0.010416667
      %v732 = vmul.f32 %v716, 0.010416667
      %v733 = vmul.f32 %v717, 0.010416667
      %v734 = vmul.f32 %v718, 0.010416667
      %v735 = vmul.f32 %v719, 0.010416667
      %v736 = vmul.f32 %v720, 0.010416667
      %v737 = vmul.f32 %v721, 0.010416667
      %v738 = vmul.f32 %v722, 0.010416667
      %v739 = vmul.f32 %v347, 0.020833334
      %v740 = vmul.f32 %v350, 0.020833334
      %v741 = vmul.f32 %v353, 0.020833334
      %v742 = vmul.f32 %v356, 0.020833334
      %v743 = vmul.f32 %v359, 0.020833334
      %v744 = vmul.f32 %v362, 0.020833334
      %v745 = vmul.f32 %v365, 0.020833334
      %v746 = vmul.f32 %v368, 0.020833334
      %v747 = vmul.f32 %v371, 0.020833334
      %v748 = vmul.f32 %v374, 0.020833334
      %v749 = vmul.f32 %v377, 0.020833334
      %v750 = vmul.f32 %v380, 0.020833334
      %v751 = vmul.f32 %v383, 0.020833334
      %v752 = vmul.f32 %v386, 0.020833334
      %v753 = vmul.f32 %v389, 0.020833334
      %v754 = vmul.f32 %v392, 0.020833334
      %v755 = vmul.f32 %v414, 0.020833334
      %v756 = vmul.f32 %v417, 0.020833334
      %v757 = vmul.f32 %v420, 0.020833334
      %v758 = vmul.f32 %v423, 0.020833334
      %v759 = vmul.f32 %v426, 0.020833334
      %v760 = vmul.f32 %v429, 0.020833334
      %v761 = vmul.f32 %v432, 0.020833334
      %v762 = vmul.f32 %v435, 0.020833334
      %v763 = vmul.f32 %v438, 0.020833334
      %v764 = vmul.f32 %v441, 0.020833334
      %v765 = vmul.f32 %v444, 0.020833334
      %v766 = vmul.f32 %v447, 0.020833334
      %v767 = vmul.f32 %v450, 0.020833334
      %v768 = vmul.f32 %v453, 0.020833334
      %v769 = vmul.f32 %v456, 0.020833334
      %v770 = vmul.f32 %v459, 0.020833334
      %v771 = vmul.f32 %v480, 0.03125
      %v772 = vmul.f32 %v483, 0.03125
      %v773 = vmul.f32 %v486, 0.03125
      %v774 = vmul.f32 %v489, 0.03125
      %v775 = vmul.f32 %v492, 0.03125
      %v776 = vmul.f32 %v495, 0.03125
      %v777 = vmul.f32 %v498, 0.03125
      %v778 = vmul.f32 %v501, 0.03125
      %v779 = vmul.f32 %v504, 0.03125
      %v780 = vmul.f32 %v507, 0.03125
      %v781 = vmul.f32 %v510, 0.03125
      %v782 = vmul.f32 %v513, 0.03125
      %v783 = vmul.f32 %v516, 0.03125
      %v784 = vmul.f32 %v519, 0.03125
      %v785 = vmul.f32 %v522, 0.03125
      %v786 = vmul.f32 %v525, 0.03125
      %v787 = vmul.f32 %v547, 0.03125
      %v788 = vmul.f32 %v550, 0.03125
      %v789 = vmul.f32 %v553, 0.03125
      %v790 = vmul.f32 %v556, 0.03125
      %v791 = vmul.f32 %v559, 0.03125
      %v792 = vmul.f32 %v562, 0.03125
      %v793 = vmul.f32 %v565, 0.03125
      %v794 = vmul.f32 %v568, 0.03125
      %v795 = vmul.f32 %v571, 0.03125
      %v796 = vmul.f32 %v574, 0.03125
      %v797 = vmul.f32 %v577, 0.03125
      %v798 = vmul.f32 %v580, 0.03125
      %v799 = vmul.f32 %v583, 0.03125
      %v800 = vmul.f32 %v586, 0.03125
      %v801 = vmul.f32 %v589, 0.03125
      %v802 = vmul.f32 %v592, 0.03125
      %v803 = vmul.f32 %v613, 0.03125
      %v804 = vmul.f32 %v616, 0.03125
      %v805 = vmul.f32 %v619, 0.03125
      %v806 = vmul.f32 %v622, 0.03125
      %v807 = vmul.f32 %v625, 0.03125
      %v808 = vmul.f32 %v628, 0.03125
      %v809 = vmul.f32 %v631, 0.03125
      %v810 = vmul.f32 %v634, 0.03125
      %v811 = vmul.f32 %v637, 0.03125
      %v812 = vmul.f32 %v640, 0.03125
      %v813 = vmul.f32 %v643, 0.03125
      %v814 = vmul.f32 %v646, 0.03125
      %v815 = vmul.f32 %v649, 0.03125
      %v816 = vmul.f32 %v652, 0.03125
      %v817 = vmul.f32 %v655, 0.03125
      %v818 = vmul.f32 %v658, 0.03125
      %vm819 = vcmask 7168
      %v820 = vsel %vm819, %v308, %v675
      %v821 = vsel %vm819, %v309, %v676
      %v822 = vsel %vm819, %v310, %v677
      %v823 = vsel %vm819, %v311, %v678
      %v824 = vsel %vm819, %v312, %v679
      %v825 = vsel %vm819, %v313, %v680
      %v826 = vsel %vm819, %v314, %v681
      %v827 = vsel %vm819, %v315, %v682
      %v828 = vsel %vm819, %v316, %v683
      %v829 = vsel %vm819, %v317, %v684
      %v830 = vsel %vm819, %v318, %v685
      %v831 = vsel %vm819, %v319, %v686
      %v832 = vsel %vm819, %v320, %v687
      %v833 = vsel %vm819, %v321, %v688
      %v834 = vsel %vm819, %v322, %v689
      %v835 = vsel %vm819, %v323, %v690
      %vm836 = vcmask 15360
      %v837 = vsel %vm836, %v820, %v723
      %v838 = vsel %vm836, %v821, %v724
      %v839 = vsel %vm836, %v822, %v725
      %v840 = vsel %vm836, %v823, %v726
      %v841 = vsel %vm836, %v824, %v727
      %v842 = vsel %vm836, %v825, %v728
      %v843 = vsel %vm836, %v826, %v729
      %v844 = vsel %vm836, %v827, %v730
      %v845 = vsel %vm836, %v828, %v731
      %v846 = vsel %vm836, %v829, %v732
      %v847 = vsel %vm836, %v830, %v733
      %v848 = vsel %vm836, %v831, %v734
      %v849 = vsel %vm836, %v832, %v735
      %v850 = vsel %vm836, %v833, %v736
      %v851 = vsel %vm836, %v834, %v737
      %v852 = vsel %vm836, %v835, %v738
      %vm853 = vcmask 23552
      %v854 = vsel %vm853, %v837, %v739
      %v855 = vsel %vm853, %v838, %v740
      %v856 = vsel %vm853, %v839, %v741
      %v857 = vsel %vm853, %v840, %v742
      %v858 = vsel %vm853, %v841, %v743
      %v859 = vsel %vm853, %v842, %v744
      %v860 = vsel %vm853, %v843, %v745
      %v861 = vsel %vm853, %v844, %v746
      %v862 = vsel %vm853, %v845, %v747
      %v863 = vsel %vm853, %v846, %v748
      %v864 = vsel %vm853, %v847, %v749
      %v865 = vsel %vm853, %v848, %v750
      %v866 = vsel %vm853, %v849, %v751
      %v867 = vsel %vm853, %v850, %v752
      %v868 = vsel %vm853, %v851, %v753
      %v869 = vsel %vm853, %v852, %v754
      %vm870 = vcmask 31744
      %v871 = vsel %vm870, %v854, %v755
      %v872 = vsel %vm870, %v855, %v756
      %v873 = vsel %vm870, %v856, %v757
      %v874 = vsel %vm870, %v857, %v758
      %v875 = vsel %vm870, %v858, %v759
      %v876 = vsel %vm870, %v859, %v760
      %v877 = vsel %vm870, %v860, %v761
      %v878 = vsel %vm870, %v861, %v762
      %v879 = vsel %vm870, %v862, %v763
      %v880 = vsel %vm870, %v863, %v764
      %v881 = vsel %vm870, %v864, %v765
      %v882 = vsel %vm870, %v865, %v766
      %v883 = vsel %vm870, %v866, %v767
      %v884 = vsel %vm870, %v867, %v768
      %v885 = vsel %vm870, %v868, %v769
      %v886 = vsel %vm870, %v869, %v770
      %vm887 = vcmask 39936
      %v888 = vsel %vm887, %v871, %v771
      %v889 = vsel %vm887, %v872, %v772
      %v890 = vsel %vm887, %v873, %v773
      %v891 = vsel %vm887, %v874, %v774
      %v892 = vsel %vm887, %v875, %v775
      %v893 = vsel %vm887, %v876, %v776
      %v894 = vsel %vm887, %v877, %v777
      %v895 = vsel %vm887, %v878, %v778
      %v896 = vsel %vm887, %v879, %v779
      %v897 = vsel %vm887, %v880, %v780
      %v898 = vsel %vm887, %v881, %v781
      %v899 = vsel %vm887, %v882, %v782
      %v900 = vsel %vm887, %v883, %v783
      %v901 = vsel %vm887, %v884, %v784
      %v902 = vsel %vm887, %v885, %v785
      %v903 = vsel %vm887, %v886, %v786
      %vm904 = vcmask 48128
      %v905 = vsel %vm904, %v888, %v787
      %v906 = vsel %vm904, %v889, %v788
      %v907 = vsel %vm904, %v890, %v789
      %v908 = vsel %vm904, %v891, %v790
      %v909 = vsel %vm904, %v892, %v791
      %v910 = vsel %vm904, %v893, %v792
      %v911 = vsel %vm904, %v894, %v793
      %v912 = vsel %vm904, %v895, %v794
      %v913 = vsel %vm904, %v896, %v795
      %v914 = vsel %vm904, %v897, %v796
      %v915 = vsel %vm904, %v898, %v797
      %v916 = vsel %vm904, %v899, %v798
      %v917 = vsel %vm904, %v900, %v799
      %v918 = vsel %vm904, %v901, %v800
      %v919 = vsel %vm904, %v902, %v801
      %v920 = vsel %vm904, %v903, %v802
      %vm921 = vcmask 56320
      %v922 = vsel %vm921, %v905, %v803
      %v923 = vsel %vm921, %v906, %v804
      %v924 = vsel %vm921, %v907, %v805
      %v925 = vsel %vm921, %v908, %v806
      %v926 = vsel %vm921, %v909, %v807
      %v927 = vsel %vm921, %v910, %v808
      %v928 = vsel %vm921, %v911, %v809
      %v929 = vsel %vm921, %v912, %v810
      %v930 = vsel %vm921, %v913, %v811
      %v931 = vsel %vm921, %v914, %v812
      %v932 = vsel %vm921, %v915, %v813
      %v933 = vsel %vm921, %v916, %v814
      %v934 = vsel %vm921, %v917, %v815
      %v935 = vsel %vm921, %v918, %v816
      %v936 = vsel %vm921, %v919, %v817
      %v937 = vsel %vm921, %v920, %v818
      %vm938 = vcmask 64512
      %939 = vst.msk [vmem:[%s210] sm:$0xff] %vm938, %v922
      %940 = vst.msk [vmem:[%s210 + $0x8] sm:$0xff] %vm938, %v923
      %941 = vst.msk [vmem:[%s210 + $0x10] sm:$0xff] %vm938, %v924
      %942 = vst.msk [vmem:[%s210 + $0x18] sm:$0xff] %vm938, %v925
      %943 = vst.msk [vmem:[%s210 + $0x20] sm:$0xff] %vm938, %v926
      %944 = vst.msk [vmem:[%s210 + $0x28] sm:$0xff] %vm938, %v927
      %945 = vst.msk [vmem:[%s210 + $0x30] sm:$0xff] %vm938, %v928
      %946 = vst.msk [vmem:[%s210 + $0x38] sm:$0xff] %vm938, %v929
      %947 = vst.msk [vmem:[%s210 + $0x40] sm:$0xff] %vm938, %v930
      %948 = vst.msk [vmem:[%s210 + $0x48] sm:$0xff] %vm938, %v931
      %949 = vst.msk [vmem:[%s210 + $0x50] sm:$0xff] %vm938, %v932
      %950 = vst.msk [vmem:[%s210 + $0x58] sm:$0xff] %vm938, %v933
      %951 = vst.msk [vmem:[%s210 + $0x60] sm:$0xff] %vm938, %v934
      %952 = vst.msk [vmem:[%s210 + $0x68] sm:$0xff] %vm938, %v935
      %953 = vst.msk [vmem:[%s210 + $0x70] sm:$0xff] %vm938, %v936
      %954 = vst.msk [vmem:[%s210 + $0x78] sm:$0xff] %vm938, %v937
      %p955 = scmp.lt.s32.totalorder %s14, 1
      %s956 = scalar_select %p955, %s14, 1
      %s957 = smul.addr %s956, 16
      %s958 = smul.addr %s957, 8
      %s959 = scalar_lea.vmem %s3, %s958
      // Predicated region
      $region33: #{tpu_custom_call.1} parent=31 // pred_check
        %p960 = pneg %p110
      $region34: #{tpu_custom_call.1} parent=31 // pred_check_branch
        %962 = sbr.rel (%p960) target = $region36
      $region35: #{tpu_custom_call.1} parent=31 // pred_region
        _
      $region36: #{tpu_custom_call.1} parent=31 // pred_fallthru
        _
    $region32: #{tpu_custom_call.1} parent=5 // pred_fallthru
      _
    %p963 = scmp.le.s32.totalorder 2, %s9
    // Predicated region
    $region37: #{tpu_custom_call.1} parent=5 // pred_check
      %p964 = pneg %p963
    $region38: #{tpu_custom_call.1} parent=5 // pred_check_branch
      %966 = sbr.rel (%p964) target = $region40
    $region39: #{tpu_custom_call.1} parent=5 // pred_region
      %s967 = ssub.s32 %s9, 2
      // Predicated region
      $region41: #{tpu_custom_call.1} parent=39 // pred_check
        %p968 = pneg %p116
      $region42: #{tpu_custom_call.1} parent=39 // pred_check_branch
        %970 = sbr.rel (%p968) target = $region44
      $region43: #{tpu_custom_call.1} parent=39 // pred_region
        %p971 = scmp.lt.s32.totalorder %s15, 1
        %s972 = scalar_select %p971, %s15, 1
        %s973 = smul.addr %s972, 16
        %s974 = smul.addr %s973, 8
        %s975 = scalar_lea.vmem %s3, %s974
      $region44: #{tpu_custom_call.1} parent=39 // pred_fallthru
        _
    $region40: #{tpu_custom_call.1} parent=5 // pred_fallthru
      _
  $region6: #{tpu_custom_call.1} parent=0 // loop_footer
    %s13 = sadd.s32 1, %s9
  $region7: #{tpu_custom_call.1} parent=0 // loop_footer_branch
    %8 = sbr.rel target = $region3
  $region8: #{tpu_custom_call.1} parent=0 // loop_exit
    _

</llo_original>
